<compile_context>
chip_gen: v5e
topology: v5e:2x2
jax: 0.10.0
libtpu: 0.0.40
codegen_flags: <defaults>
</compile_context>

<pallas_src>
import jax
import jax.numpy as jnp
from jax.experimental import pallas as pl
from jax.experimental.pallas import tpu as pltpu


def odefunc_kernel(w_ref, b_ref, y_ref, o_ref):
    # w_ref: (2, 2) fused weight in SMEM, layout (in_feature, out_feature)
    # b_ref: (2,)   fused bias in SMEM
    # y_ref, o_ref: (2, TB) feature-major tiles in VMEM (batch on the lane axis)
    y = y_ref[...]
    y3 = y * y * y                       # elementwise cube on the VPU

    r0 = y3[0:1, :]                      # contribution of input feature 0, (1, TB)
    r1 = y3[1:2, :]                      # contribution of input feature 1, (1, TB)

    # out[j, :] = W[0, j] * y3[0, :] + W[1, j] * y3[1, :] + b[j]
    # (scalars come from SMEM and broadcast over the lane-dense batch tile)
    out0 = w_ref[0, 0] * r0 + w_ref[1, 0] * r1 + b_ref[0]
    out1 = w_ref[0, 1] * r0 + w_ref[1, 1] * r1 + b_ref[1]

    o_ref[...] = jnp.concatenate([out0, out1], axis=0).astype(o_ref.dtype)


def ode_func_forward(t, y, w1, b1, w2, b2, *, tb=1024):
    """Forward of ODEFunc. `t` is unused (matches the PyTorch signature).

    y:  (B, 2) float32
    w1: (2, 10), b1: (10,), w2: (10, 2), b2: (2,)   (weights already transposed
    to (in_features, out_features) relative to torch's nn.Linear storage).
    """
    del t
    B = y.shape[0]
    dtype = y.dtype

    # Exact algebraic fusion of the two affine layers (no activation between):
    #   (y3 @ w1 + b1) @ w2 + b2  ==  y3 @ (w1 @ w2) + (b1 @ w2 + b2)
    w_fused = (w1 @ w2).astype(jnp.float32)        # (2, 2)
    b_fused = (b1 @ w2 + b2).astype(jnp.float32)   # (2,)

    # Feature-major / lane-dense layout: batch on the 128-lane axis.
    y_fm = y.T                                     # (2, B)

    # Batch tile: multiple of 128 lanes when possible, else one full block
    # (a block equal to the full array dims is always legal).
    if (B % 128 == 0) and (B % tb == 0) and (tb % 128 == 0):
        block_b = tb
    else:
        block_b = B
    grid = (B // block_b,)

    out_fm = pl.pallas_call(
        odefunc_kernel,
        out_shape=jax.ShapeDtypeStruct((2, B), dtype),
        grid=grid,
        in_specs=[
            pl.BlockSpec(memory_space=pltpu.MemorySpace.SMEM),   # fused weight (2,2)
            pl.BlockSpec(memory_space=pltpu.MemorySpace.SMEM),   # fused bias   (2,)
            pl.BlockSpec((2, block_b), lambda i: (0, i)),        # y tile
        ],
        out_specs=pl.BlockSpec((2, block_b), lambda i: (0, i)),
        compiler_params=pltpu.CompilerParams(
            dimension_semantics=("parallel",),
        ),
    )(w_fused, b_fused, y_fm)

    return out_fm.T                                # back to (B, 2)


def init_params(key):
    # nn.Linear(2, 10) then nn.Linear(10, 2); weights ~ N(0, 0.1), biases = 0.
    # Stored transposed w.r.t. torch ((in, out) instead of (out, in)).
    k1, k2 = jax.random.split(key)
    w1 = 0.1 * jax.random.normal(k1, (2, 10), dtype=jnp.float32)
    b1 = jnp.zeros((10,), dtype=jnp.float32)
    w2 = 0.1 * jax.random.normal(k2, (10, 2), dtype=jnp.float32)
    b2 = jnp.zeros((2,), dtype=jnp.float32)
    return w1, b1, w2, b2


if __name__ == "__main__":
    key = jax.random.PRNGKey(0)
    kp, ky = jax.random.split(key)
    w1, b1, w2, b2 = init_params(kp)

    B = 512                                   # small demo batch; 4 grid steps of 128
    y = jax.random.normal(ky, (B, 2), dtype=jnp.float32)
    t = jnp.float32(0.0)                      # unused by forward, kept for parity

    out = ode_func_forward(t, y, w1, b1, w2, b2, tb=128)
    out = jax.block_until_ready(out)

    # Reference check in plain JAX (unfused two-layer path).
    ref = ((y ** 3) @ w1 + b1) @ w2 + b2
    assert out.shape == (B, 2)
    assert jnp.allclose(out, ref, atol=1e-5, rtol=1e-5), float(
        jnp.max(jnp.abs(out - ref))
    )

    print("KERNEL_OK")
</pallas_src>

<mosaic_0001>
module attributes {stable_mosaic.version = 11 : i64} {
  func.func @odefunc_kernel(%arg0: i32, %arg1: memref<2x2xf32, #tpu.memory_space<smem>>, %arg2: memref<2xf32, #tpu.memory_space<smem>>, %arg3: memref<2x128xf32, #tpu.memory_space<vmem>>, %arg4: memref<2x128xf32, #tpu.memory_space<vmem>>) attributes {dimension_semantics = [#tpu.dimension_semantics<parallel>], iteration_bounds = array<i64: 4>, scalar_prefetch = 0 : i64, scratch_operands = 0 : i64, tpu.core_type = #tpu.core_type<tc>, window_params = [{transform_indices = @transform_0, window_bounds = array<i64: 2, 2>}, {transform_indices = @transform_1, window_bounds = array<i64: 2>}, {transform_indices = @transform_2, window_bounds = array<i64: 2, 128>}, {transform_indices = @transform_3, window_bounds = array<i64: 2, 128>}]} {
    %c0 = arith.constant 0 : index
    %c0_0 = arith.constant 0 : index
    %0 = vector.load %arg3[%c0, %c0_0] : memref<2x128xf32, #tpu.memory_space<vmem>>, vector<2x128xf32>
    %1 = arith.mulf %0, %0 : vector<2x128xf32>
    %2 = arith.mulf %1, %0 : vector<2x128xf32>
    %3 = vector.extract_strided_slice %2 {offsets = [0, 0], sizes = [1, 128], strides = [1, 1]} : vector<2x128xf32> to vector<1x128xf32>
    %4 = vector.extract_strided_slice %2 {offsets = [1, 0], sizes = [1, 128], strides = [1, 1]} : vector<2x128xf32> to vector<1x128xf32>
    %c0_1 = arith.constant 0 : index
    %c0_2 = arith.constant 0 : index
    %5 = memref.load %arg1[%c0_1, %c0_2] : memref<2x2xf32, #tpu.memory_space<smem>>
    %6 = vector.broadcast %5 : f32 to vector<1x128xf32>
    %7 = arith.mulf %6, %3 : vector<1x128xf32>
    %c1 = arith.constant 1 : index
    %c0_3 = arith.constant 0 : index
    %8 = memref.load %arg1[%c1, %c0_3] : memref<2x2xf32, #tpu.memory_space<smem>>
    %9 = vector.broadcast %8 : f32 to vector<1x128xf32>
    %10 = arith.mulf %9, %4 : vector<1x128xf32>
    %11 = arith.addf %7, %10 : vector<1x128xf32>
    %c0_4 = arith.constant 0 : index
    %12 = memref.load %arg2[%c0_4] : memref<2xf32, #tpu.memory_space<smem>>
    %13 = vector.broadcast %12 : f32 to vector<1x128xf32>
    %14 = arith.addf %11, %13 : vector<1x128xf32>
    %c0_5 = arith.constant 0 : index
    %c1_6 = arith.constant 1 : index
    %15 = memref.load %arg1[%c0_5, %c1_6] : memref<2x2xf32, #tpu.memory_space<smem>>
    %16 = vector.broadcast %15 : f32 to vector<1x128xf32>
    %17 = arith.mulf %16, %3 : vector<1x128xf32>
    %c1_7 = arith.constant 1 : index
    %c1_8 = arith.constant 1 : index
    %18 = memref.load %arg1[%c1_7, %c1_8] : memref<2x2xf32, #tpu.memory_space<smem>>
    %19 = vector.broadcast %18 : f32 to vector<1x128xf32>
    %20 = arith.mulf %19, %4 : vector<1x128xf32>
    %21 = arith.addf %17, %20 : vector<1x128xf32>
    %c1_9 = arith.constant 1 : index
    %22 = memref.load %arg2[%c1_9] : memref<2xf32, #tpu.memory_space<smem>>
    %23 = vector.broadcast %22 : f32 to vector<1x128xf32>
    %24 = arith.addf %21, %23 : vector<1x128xf32>
    %25 = tpu.concatenate %14, %24 in 0 : vector<1x128xf32>, vector<1x128xf32> -> vector<2x128xf32>
    %c0_10 = arith.constant 0 : index
    %c0_11 = arith.constant 0 : index
    %26 = vector.load %arg4[%c0_10, %c0_11] : memref<2x128xf32, #tpu.memory_space<vmem>>, vector<2x128xf32>
    tpu.vector_store %arg4[%c0_10, %c0_11], %25 {strides = array<i32>} : memref<2x128xf32, #tpu.memory_space<vmem>>, vector<2x128xf32>,
    return
  }
  func.func @transform_0(%arg0: i32) -> (i32, i32) {
    %c0_i32 = arith.constant 0 : i32
    %c0_i32_0 = arith.constant 0 : i32
    %c0_i32_1 = arith.constant 0 : i32
    return %c0_i32, %c0_i32_0 : i32, i32
  }
  func.func @transform_1(%arg0: i32) -> i32 {
    %c0_i32 = arith.constant 0 : i32
    %c0_i32_0 = arith.constant 0 : i32
    return %c0_i32 : i32
  }
  func.func @transform_2(%arg0: i32) -> (i32, i32) {
    %c0_i32 = arith.constant 0 : i32
    %c0_i32_0 = arith.constant 0 : i32
    return %c0_i32, %arg0 : i32, i32
  }
  func.func @transform_3(%arg0: i32) -> (i32, i32) {
    %c0_i32 = arith.constant 0 : i32
    %c0_i32_0 = arith.constant 0 : i32
    return %c0_i32, %arg0 : i32, i32
  }
}

</mosaic_0001>

<llo_original>
// kernel: tpu_custom_call.1
$region0: #{tpu_custom_call.1}
  #allocation0 [shape = 'u32[]', space=smem, size = 0x4, offset = 0x4, fixed_abs, tag = 'smem constant byte address 0x4 - core index']
  #allocation1 [shape = 'u32[72,128]{1,0:T(1,128)}', space=vmem, size = 0x9000, scoped, tag = 'internal scratch']
  %s0 = inlined_call_operand.hbm [shape: f32[2,2], index: 0, kind: input, shape index: {}]
  %s1 = inlined_call_operand.hbm [shape: f32[2], index: 1, kind: input, shape index: {}]
  %s2 = inlined_call_operand.hbm [shape: f32[2,512], index: 2, kind: input, shape index: {}]
  %s3 = inlined_call_operand.hbm [shape: f32[2,512], index: 3, kind: output, shape index: {}]
  %s4 = sld [smem:[#allocation0]]
  $region57: #{tpu_custom_call.1} parent=0
    _
  %s6 = ssub.s32 1, %s4
  %s7 = scalar_select 0, %s6, %s4
  $region1: #{tpu_custom_call.1} parent=0
    #allocation2 [shape = 'u8[1024]{0}', space=smem, size = 0x400, scoped, tag = 'input window, operand 0, single buffered']
    #allocation3 [shape = 's32[2]{0}', space=sflag, size = 0x8, scoped, tag = 'scoped memory for tpu_custom_call.1']
    #allocation4 [shape = 's32[2]{0}', space=sflag, size = 0x8, scoped, tag = 'scoped memory for tpu_custom_call.1']
    #allocation5 [shape = 's32[2]{0}', space=sflag, size = 0x8, scoped, tag = 'scoped memory for tpu_custom_call.1']
    #allocation6 [shape = 'u8[512]{0}', space=smem, size = 0x200, scoped, tag = 'input window, operand 1, single buffered']
    #allocation7 [shape = 's32[1]{0}', space=sflag, size = 0x4, scoped, tag = 'scoped memory for tpu_custom_call.1']
    #allocation8 [shape = 'u8[2048]{0}', space=vmem, size = 0x800, scoped, tag = 'input window, operand 2']
    #allocation9 [shape = 'u8[2048]{0}', space=vmem, size = 0x800, scoped, tag = 'output window, operand 0']
    %8 = vsyncpa [#allocation5], 0
    %9 = vsyncpa [#allocation7], 0
    %10 = vsyncpa [#allocation3], 0
    %s11 = scalar_lea.sflag [#allocation3], 1
    %12 = vsyncpa %s11, 0
    %13 = vsyncpa [#allocation4], 0
    %s14 = scalar_lea.sflag [#allocation4], 1
    %15 = vsyncpa %s14, 0
    loop: start=0, step=1, limit=6
    $region2: #{tpu_custom_call.1} parent=1 // loop_pre_header
      _
    $region3: #{tpu_custom_call.1} parent=1 // loop_header
      %s17 = sphi 0, %s21
      %p18 = scmp.ge.s32.totalorder %s17, 6
      %s25 = sphi 0, %s25
      %s27 = sphi 0, %s25
      %s28 = sphi 0, %s27
      %s42 = sphi 0, %s28
      %s46 = sphi 0, %s46
      %s48 = sphi 0, %s46
      %s49 = sphi 0, %s48
      %s63 = sphi 0, %s49
      %s69 = sphi 0, %s71
      %s72 = sphi 0, %s69
      %s73 = sphi 0, %s72
      %s89 = sphi 0, %s73
      %s95 = sphi 0, %s97
      %s98 = sphi 0, %s95
      %s99 = sphi 0, %s98
      %s115 = sphi 0, %s99
    $region4: #{tpu_custom_call.1} parent=1 // loop_header_branch
      %20 = sbr.rel (%p18) target = $region8
    $region5: #{tpu_custom_call.1} parent=1 // loop_body
      %s22 = ssub.s32 %s17, 1
      %s23 = ssub.s32 %s17, 2
      %s24 = sadd.s32 %s17, 1
      %s26 = sadd.s32 %s25, 1
      %p29 = scmp.eq.s32.totalorder %s17, 3
      %p30 = scmp.ne.s32.totalorder %s25, %s27
      %p31 = scmp.eq.s32.totalorder %s17, 0
      %p32 = por %p30, %p31
      %p33 = scmp.ne.s32.totalorder %s25, %s27
      %p34 = scmp.eq.s32.totalorder %s22, 3
      %p35 = por %p33, %p34
      %p36 = scmp.ne.s32.totalorder %s27, %s28
      %p37 = scmp.eq.s32.totalorder %s22, 0
      %p38 = por %p36, %p37
      %p39 = scmp.ne.s32.totalorder %s27, %s28
      %p40 = scmp.eq.s32.totalorder %s23, 3
      %p41 = por %p39, %p40
      %p43 = scmp.ne.s32.totalorder %s28, %s42
      %p44 = scmp.eq.s32.totalorder %s23, 0
      %p45 = por %p43, %p44
      %s47 = sadd.s32 %s46, 1
      %p50 = scmp.eq.s32.totalorder %s17, 3
      %p51 = scmp.ne.s32.totalorder %s46, %s48
      %p52 = scmp.eq.s32.totalorder %s17, 0
      %p53 = por %p51, %p52
      %p54 = scmp.ne.s32.totalorder %s46, %s48
      %p55 = scmp.eq.s32.totalorder %s22, 3
      %p56 = por %p54, %p55
      %p57 = scmp.ne.s32.totalorder %s48, %s49
      %p58 = scmp.eq.s32.totalorder %s22, 0
      %p59 = por %p57, %p58
      %p60 = scmp.ne.s32.totalorder %s48, %s49
      %p61 = scmp.eq.s32.totalorder %s23, 3
      %p62 = por %p60, %p61
      %p64 = scmp.ne.s32.totalorder %s49, %s63
      %p65 = scmp.eq.s32.totalorder %s23, 0
      %p66 = por %p64, %p65
      %s67 = ssub.s32 %s17, %s24
      %p68 = scmp.eq.s32.totalorder %s67, 0
      %s70 = sadd.s32 %s69, 1
      %s71 = scalar_select %p68, %s69, %s70
      %p74 = pneg %p68
      %p75 = scmp.eq.s32.totalorder %s17, 3
      %p76 = por %p74, %p75
      %p77 = scmp.ne.s32.totalorder %s69, %s72
      %p78 = scmp.eq.s32.totalorder %s17, 0
      %p79 = por %p77, %p78
      %p80 = scmp.ne.s32.totalorder %s69, %s72
      %p81 = scmp.eq.s32.totalorder %s22, 3
      %p82 = por %p80, %p81
      %p83 = scmp.ne.s32.totalorder %s72, %s73
      %p84 = scmp.eq.s32.totalorder %s22, 0
      %p85 = por %p83, %p84
      %p86 = scmp.ne.s32.totalorder %s72, %s73
      %p87 = scmp.eq.s32.totalorder %s23, 3
      %p88 = por %p86, %p87
      %p90 = scmp.ne.s32.totalorder %s73, %s89
      %p91 = scmp.eq.s32.totalorder %s23, 0
      %p92 = por %p90, %p91
      %s93 = ssub.s32 %s17, %s24
      %p94 = scmp.eq.s32.totalorder %s93, 0
      %s96 = sadd.s32 %s95, 1
      %s97 = scalar_select %p94, %s95, %s96
      %p100 = pneg %p94
      %p101 = scmp.eq.s32.totalorder %s17, 3
      %p102 = por %p100, %p101
      %p103 = scmp.ne.s32.totalorder %s95, %s98
      %p104 = scmp.eq.s32.totalorder %s17, 0
      %p105 = por %p103, %p104
      %p106 = scmp.ne.s32.totalorder %s95, %s98
      %p107 = scmp.eq.s32.totalorder %s22, 3
      %p108 = por %p106, %p107
      %p109 = scmp.ne.s32.totalorder %s98, %s99
      %p110 = scmp.eq.s32.totalorder %s22, 0
      %p111 = por %p109, %p110
      %p112 = scmp.ne.s32.totalorder %s98, %s99
      %p113 = scmp.eq.s32.totalorder %s23, 3
      %p114 = por %p112, %p113
      %p116 = scmp.ne.s32.totalorder %s99, %s115
      %p117 = scmp.eq.s32.totalorder %s23, 0
      %p118 = por %p116, %p117
      %p119 = scmp.le.s32.totalorder 1, %s17
      %p120 = scmp.lt.s32.totalorder %s17, 5
      %p121 = pnand %p119, %p120
      %p122 = pneg %p121
      // Predicated region
      $region9: #{tpu_custom_call.1} parent=5 // pred_check
        _
      $region10: #{tpu_custom_call.1} parent=5 // pred_check_branch
        %124 = sbr.rel (%p121) target = $region12
      $region11: #{tpu_custom_call.1} parent=5 // pred_region
        %s125 = ssub.s32 %s17, 1
        // Predicated region
        $region13: #{tpu_custom_call.1} parent=11 // pred_check
          %p126 = pneg %p38
        $region14: #{tpu_custom_call.1} parent=11 // pred_check_branch
          %128 = sbr.rel (%p126) target = $region16
        $region15: #{tpu_custom_call.1} parent=11 // pred_region
          %130 = vsyncadd [#allocation5], 0
          %s132 = sshll.u32 %s0, 4
          %s133 = int_to_ptr.hbm [resolvable:$true] %s132
          %135 = dma.hbm_to_smem %s133, 32, [#allocation2], [#allocation5]
        $region16: #{tpu_custom_call.1} parent=11 // pred_fallthru
          _
        // Predicated region
        $region17: #{tpu_custom_call.1} parent=11 // pred_check
          %p136 = pneg %p59
        $region18: #{tpu_custom_call.1} parent=11 // pred_check_branch
          %138 = sbr.rel (%p136) target = $region20
        $region19: #{tpu_custom_call.1} parent=11 // pred_region
          %140 = vsyncadd [#allocation7], 0
          %s142 = sshll.u32 %s1, 4
          %s143 = int_to_ptr.hbm [resolvable:$true] %s142
          %145 = dma.hbm_to_smem %s143, 16, [#allocation6], [#allocation7]
        $region20: #{tpu_custom_call.1} parent=11 // pred_fallthru
          _
      $region12: #{tpu_custom_call.1} parent=5 // pred_fallthru
        _
      %p146 = scmp.lt.s32.totalorder %s17, 4
      // Predicated region
      $region21: #{tpu_custom_call.1} parent=5 // pred_check
        %p147 = pneg %p146
      $region22: #{tpu_custom_call.1} parent=5 // pred_check_branch
        %149 = sbr.rel (%p147) target = $region24
      $region23: #{tpu_custom_call.1} parent=5 // pred_region
        // Predicated region
        $region25: #{tpu_custom_call.1} parent=23 // pred_check
          %p150 = pneg %p79
        $region26: #{tpu_custom_call.1} parent=23 // pred_check_branch
          %152 = sbr.rel (%p150) target = $region28
        $region27: #{tpu_custom_call.1} parent=23 // pred_region
          %s153 = sand.u32 %s69, 1
          %s154 = scalar_lea.sflag [#allocation3], %s153
          %s155 = sand.u32 %s69, 1
          %s156 = smul.addr %s155, 2
          %s157 = scalar_lea.vmem [#allocation8], %s156
          %159 = vsyncadd %s154, 0
          %s160 = smul.addr %s17, 2
          %s161 = scalar_lea.hbm %s2, %s160
          %s163 = sshll.u32 %s161, 4
          %s164 = int_to_ptr.hbm [resolvable:$true] %s163
          %s165 = sshll.u32 %s157, 4
          %s166 = int_to_ptr.vmem [resolvable:$true] %s165
          %168 = dma.hbm_to_vmem [thread:$0]  %s164, 32, %s166, %s154
        $region28: #{tpu_custom_call.1} parent=23 // pred_fallthru
          _
      $region24: #{tpu_custom_call.1} parent=5 // pred_fallthru
        _
      %p169 = scmp.le.s32.totalorder 1, %s17
      %p170 = scmp.lt.s32.totalorder %s17, 5
      %p171 = pnand %p169, %p170
      %p172 = pneg %p171
      // Predicated region
      $region29: #{tpu_custom_call.1} parent=5 // pred_check
        _
      $region30: #{tpu_custom_call.1} parent=5 // pred_check_branch
        %174 = sbr.rel (%p171) target = $region32
      $region31: #{tpu_custom_call.1} parent=5 // pred_region
        %s175 = ssub.s32 %s17, 1
        // Predicated region
        $region33: #{tpu_custom_call.1} parent=31 // pred_check
          %p176 = pneg %p38
        $region34: #{tpu_custom_call.1} parent=31 // pred_check_branch
          %178 = sbr.rel (%p176) target = $region36
        $region35: #{tpu_custom_call.1} parent=31 // pred_region
          %180 = dma.done [#allocation5], 32
        $region36: #{tpu_custom_call.1} parent=31 // pred_fallthru
          _
        // Predicated region
        $region37: #{tpu_custom_call.1} parent=31 // pred_check
          %p181 = pneg %p59
        $region38: #{tpu_custom_call.1} parent=31 // pred_check_branch
          %183 = sbr.rel (%p181) target = $region40
        $region39: #{tpu_custom_call.1} parent=31 // pred_region
          %185 = dma.done [#allocation7], 16
        $region40: #{tpu_custom_call.1} parent=31 // pred_fallthru
          _
        %s186 = sand.u32 %s72, 1
        %s187 = scalar_lea.sflag [#allocation3], %s186
        %s188 = sand.u32 %s72, 1
        %s189 = smul.addr %s188, 2
        %s190 = scalar_lea.vmem [#allocation8], %s189
        // Predicated region
        $region41: #{tpu_custom_call.1} parent=31 // pred_check
          %p191 = pneg %p85
        $region42: #{tpu_custom_call.1} parent=31 // pred_check_branch
          %193 = sbr.rel (%p191) target = $region44
        $region43: #{tpu_custom_call.1} parent=31 // pred_region
          %195 = dma.done %s187, 32
        $region44: #{tpu_custom_call.1} parent=31 // pred_fallthru
          _
        %196 = sfence
        %p197 = pneg %p38
        %p198 = pneg %p35
        %p199 = pneg %p59
        %p200 = pneg %p56
        %s201 = sand.u32 %s72, 1
        %s202 = scalar_lea.sflag [#allocation3], %s201
        %s203 = sand.u32 %s72, 1
        %s204 = smul.addr %s203, 2
        %s205 = scalar_lea.vmem [#allocation8], %s204
        %p206 = pneg %p85
        %p207 = pneg %p82
        %p208 = pneg %p111
        %p209 = pneg %p108
        %s210 = sand.u32 %s98, 1
        %s211 = scalar_lea.sflag [#allocation4], %s210
        %s212 = sand.u32 %s98, 1
        %s213 = smul.addr %s212, 2
        %s214 = scalar_lea.vmem [#allocation9], %s213
        %v215 = vld [vmem:[%s190] sm:$0x3]
        %v216 = vmul.f32 %v215, %v215
        %v217 = vmul.f32 %v216, %v215
        %s218 = sld [smem:[#allocation2]]
        %v219 = vstv %s218
        %v220 = vmul.f32 %v219, %v217
        %s221 = sld [smem:[#allocation2 + $0x80]]
        %v222 = vstv %s221
        %v223 = vmul.f32 %v222, %v217
        %v225 = vrot.slane %v223, 1
        %v227 = vadd.f32 %v220, %v225
        %s228 = sld [smem:[#allocation6]]
        %v229 = vstv %s228
        %v230 = vadd.f32 %v227, %v229
        %s231 = sld [smem:[#allocation2 + $0x1]]
        %v232 = vstv %s231
        %v233 = vmul.f32 %v232, %v217
        %s234 = sld [smem:[#allocation2 + $0x81]]
        %v235 = vstv %s234
        %v236 = vmul.f32 %v235, %v217
        %v238 = vrot.slane %v236, 1
        %v240 = vadd.f32 %v233, %v238
        %s241 = sld [smem:[#allocation6 + $0x1]]
        %v242 = vstv %s241
        %v243 = vadd.f32 %v240, %v242
        %v245 = vrot.slane %v243, 7
        %vm247 = vcmask 1040384
        %v248 = vsel %vm247, %v230, %v245
        %249 = vst [vmem:[%s214] sm:$0x3] %v248
        %s250 = sand.u32 %s98, 1
        %s251 = scalar_lea.sflag [#allocation4], %s250
        %s252 = sand.u32 %s98, 1
        %s253 = smul.addr %s252, 2
        %s254 = scalar_lea.vmem [#allocation9], %s253
        // Predicated region
        $region45: #{tpu_custom_call.1} parent=31 // pred_check
          %p255 = pneg %p108
        $region46: #{tpu_custom_call.1} parent=31 // pred_check_branch
          %257 = sbr.rel (%p255) target = $region48
        $region47: #{tpu_custom_call.1} parent=31 // pred_region
          %259 = vsyncadd %s251, 0
          %s260 = smul.addr %s22, 2
          %s261 = scalar_lea.hbm %s3, %s260
          %s263 = sshll.u32 %s254, 4
          %s264 = int_to_ptr.vmem [resolvable:$true] %s263
          %s265 = sshll.u32 %s261, 4
          %s266 = int_to_ptr.hbm [resolvable:$true] %s265
          %268 = dma.vmem_to_hbm [thread:$0]  %s264, 32, %s266, %s251
        $region48: #{tpu_custom_call.1} parent=31 // pred_fallthru
          _
      $region32: #{tpu_custom_call.1} parent=5 // pred_fallthru
        _
      %p269 = scmp.le.s32.totalorder 2, %s17
      // Predicated region
      $region49: #{tpu_custom_call.1} parent=5 // pred_check
        %p270 = pneg %p269
      $region50: #{tpu_custom_call.1} parent=5 // pred_check_branch
        %272 = sbr.rel (%p270) target = $region52
      $region51: #{tpu_custom_call.1} parent=5 // pred_region
        %s273 = ssub.s32 %s17, 2
        // Predicated region
        $region53: #{tpu_custom_call.1} parent=51 // pred_check
          %p274 = pneg %p114
        $region54: #{tpu_custom_call.1} parent=51 // pred_check_branch
          %276 = sbr.rel (%p274) target = $region56
        $region55: #{tpu_custom_call.1} parent=51 // pred_region
          %s277 = sand.u32 %s99, 1
          %s278 = scalar_lea.sflag [#allocation4], %s277
          %s279 = sand.u32 %s99, 1
          %s280 = smul.addr %s279, 2
          %s281 = scalar_lea.vmem [#allocation9], %s280
          %283 = dma.done %s278, 32
        $region56: #{tpu_custom_call.1} parent=51 // pred_fallthru
          _
      $region52: #{tpu_custom_call.1} parent=5 // pred_fallthru
        _
    $region6: #{tpu_custom_call.1} parent=1 // loop_footer
      %s21 = sadd.s32 1, %s17
    $region7: #{tpu_custom_call.1} parent=1 // loop_footer_branch
      %16 = sbr.rel target = $region3
    $region8: #{tpu_custom_call.1} parent=1 // loop_exit
      _
    %284 = vsyncpa [#allocation3], 1
    %s285 = scalar_lea.sflag [#allocation3], 1
    %286 = vsyncpa %s285, 1
    %287 = vsyncpa [#allocation4], 1
    %s288 = scalar_lea.sflag [#allocation4], 1
    %289 = vsyncpa %s288, 1
    %290 = vsyncpa [#allocation5], 1
    %s291 = scalar_lea.sflag [#allocation5], 1
    %292 = vsyncpa %s291, 1
    %293 = vsyncpa [#allocation7], 1

</llo_original>
